<compile_context>
chip_gen: v7x
topology: tpu7x:2x2x1
jax: 0.10.0
libtpu: 0.0.40
codegen_flags: <defaults>
</compile_context>

<pallas_src>
import jax
import jax.numpy as jnp
from jax.experimental import pallas as pl
from jax.experimental.pallas import tpu as pltpu

NX = 16  # module-level `nx` in the torch code (radial points per profile)


def _profiles_kernel(act_ref, ct_ref, o_ref, acc_ref):
    # act_ref: (tB, A, tT)   current actuator tile (native dtype)
    # ct_ref : (A, Pnx_pad)  constant transposed/padded parameter (resident)
    # o_ref  : (tB, Pnx_pad) lane-dense output tile
    # acc_ref: (tB, A, tT)   f32 VMEM scratch holding partial sums over T tiles
    k = pl.program_id(1)

    @pl.when(k == 0)
    def _init():
        acc_ref[...] = jnp.zeros_like(acc_ref)

    # Elementwise accumulate over T tiles: pure VPU adds, f32 accumulation
    # regardless of the input dtype.
    acc_ref[...] += act_ref[...].astype(jnp.float32)

    @pl.when(k == pl.num_programs(1) - 1)
    def _finalize():
        act_sum = acc_ref[...].sum(axis=-1)            # one XLU reduce per B tile
        o_ref[...] = jnp.dot(
            act_sum, ct_ref[...], preferred_element_type=jnp.float32
        ).astype(o_ref.dtype)                          # one (tB,A)x(A,Pnx_pad) MXU dot


def _pick_b_tile(B):
    # Full-dim block is always legal; tile only when B is large and 8-aligned.
    if B > 8 and B % 8 == 0:
        for cand in (128, 64, 32, 16, 8):
            if B % cand == 0:
                return cand
    return B


def _pick_t_tile(T, tB, A, itemsize, target_block_bytes=2 << 20):
    # Conservative ~2 MiB actuator tile: double-buffered it stays far below
    # the v5e 16 MiB scoped default and v7x's 64 MiB physical VMEM.
    if T <= 512:
        return T, T                                   # single full-dim T block
    tT = target_block_bytes // max(1, tB * A * itemsize)
    tT = max(128, (tT // 128) * 128)                  # lane-aligned tile
    T_pad = -(-T // tT) * tT
    return tT, T_pad


def prepare_c_for_kernel(c):
    """One-time parameter prep (NOT per forward): transpose c to (A, Pnx) and
    zero-pad the profile axis to a multiple of 128 for lane-dense stores."""
    _, pnx, a = c.shape
    pnx_pad = -(-pnx // 128) * 128
    ct = jnp.zeros((a, pnx_pad), jnp.float32)
    ct = ct.at[:, :pnx].set(c.reshape(pnx, a).astype(jnp.float32).T)
    return ct


def profiles_from_actuators_advanced(ct_pad, nprofiles, input_profiles,
                                     input_actuators, input_parameters):
    """JAX/Pallas equivalent of ProfilesFromActuatorsAdvanced.forward.

    ct_pad:           (A, Pnx_pad) from prepare_c_for_kernel(c)
    input_actuators:  (B, A, T) any float dtype
    returns:          (B, nprofiles, NX) float32
    """
    del input_profiles, input_parameters              # unused by the torch forward
    B, A, T = input_actuators.shape
    pnx = nprofiles * NX
    pnx_pad = ct_pad.shape[1]

    tB = _pick_b_tile(B)
    tT, T_pad = _pick_t_tile(T, tB, A, input_actuators.dtype.itemsize)

    acts = input_actuators
    if T_pad != T:                                    # zero padding: sum unchanged
        acts = jnp.pad(acts, ((0, 0), (0, 0), (0, T_pad - T)))

    grid = (B // tB, T_pad // tT)

    # Explicit VMEM budget: double-buffered tiles + f32 accumulator + headroom.
    vmem_needed = (2 * tB * A * tT * acts.dtype.itemsize   # actuator tiles
                   + tB * A * tT * 4                       # f32 accumulator scratch
                   + 2 * A * pnx_pad * 4                   # cT tiles
                   + 2 * tB * pnx_pad * 4)                 # output tiles
    vmem_limit = int(min(max(2 * vmem_needed + (1 << 20), 32 << 20), 48 << 20))

    out = pl.pallas_call(
        _profiles_kernel,
        out_shape=jax.ShapeDtypeStruct((B, pnx_pad), jnp.float32),
        grid=grid,
        in_specs=[
            pl.BlockSpec((tB, A, tT), lambda b, k: (b, 0, k)),
            pl.BlockSpec((A, pnx_pad), lambda b, k: (0, 0)),
        ],
        out_specs=pl.BlockSpec((tB, pnx_pad), lambda b, k: (b, 0)),
        scratch_shapes=[pltpu.VMEM((tB, A, tT), jnp.float32)],
        compiler_params=pltpu.CompilerParams(
            dimension_semantics=("parallel", "arbitrary"),
            vmem_limit_bytes=vmem_limit,
        ),
    )(acts, ct_pad)

    # Drop lane padding; (B, Pnx) reshapes directly into (B, nprofiles, NX).
    return out[:, :pnx].reshape(B, nprofiles, NX)


if __name__ == "__main__":
    nprofiles = 4
    nactuators = 8
    B = 2
    T = 8

    key = jax.random.PRNGKey(0)
    k_c, k_act, k_prof, k_par = jax.random.split(key, 4)

    # deterministic "parameter" init (torch.randn equivalent shape)
    c = jax.random.normal(k_c, (1, nprofiles * NX, nactuators), dtype=jnp.float32)

    input_actuators = jax.random.normal(k_act, (B, nactuators, T), dtype=jnp.float32)
    input_profiles = jax.random.normal(k_prof, (B, nprofiles, NX), dtype=jnp.float32)   # unused
    input_parameters = jax.random.normal(k_par, (B, 3), dtype=jnp.float32)              # unused

    ct_pad = prepare_c_for_kernel(c)   # one-time parameter-setup prep

    out = profiles_from_actuators_advanced(
        ct_pad, nprofiles, input_profiles, input_actuators, input_parameters)
    out = jax.block_until_ready(out)

    # pure-JAX reference of the torch forward (bmm then sum over time)
    ref = jnp.einsum(
        "pa,bat->bpt", c.reshape(nprofiles * NX, nactuators), input_actuators
    ).sum(-1).reshape(B, nprofiles, NX)

    assert out.shape == (B, nprofiles, NX)
    assert jnp.allclose(out, ref, atol=1e-4, rtol=1e-4)
    print("KERNEL_OK")
</pallas_src>

<mosaic_0001>
module attributes {stable_mosaic.version = 11 : i64} {
  func.func @_profiles_kernel(%arg0: i32, %arg1: i32, %arg2: memref<2x8x8xf32, #tpu.memory_space<vmem>>, %arg3: memref<8x128xf32, #tpu.memory_space<vmem>>, %arg4: memref<2x128xf32, #tpu.memory_space<vmem>>, %arg5: memref<2x8x8xf32, #tpu.memory_space<vmem>>) attributes {dimension_semantics = [#tpu.dimension_semantics<parallel>, #tpu.dimension_semantics<arbitrary>], iteration_bounds = array<i64: 1, 1>, scalar_prefetch = 0 : i64, scratch_operands = 1 : i64, tpu.core_type = #tpu.core_type<tc>, window_params = [{transform_indices = @transform_0, window_bounds = array<i64: 2, 8, 8>}, {pipeline_mode = #tpu.pipeline_mode<synchronous>, transform_indices = @transform_1, window_bounds = array<i64: 8, 128>}, {transform_indices = @transform_2, window_bounds = array<i64: 2, 128>}]} {
    %c0_i32 = arith.constant 0 : i32
    %0 = arith.cmpi eq, %arg1, %c0_i32 : i32
    %1 = arith.extui %0 : i1 to i32
    %c0_i32_0 = arith.constant 0 : i32
    %2 = arith.cmpi ne, %1, %c0_i32_0 : i32
    scf.if %2 {
      %cst = arith.constant 0.000000e+00 : f32
      %10 = vector.broadcast %cst : f32 to vector<2x8x8xf32>
      %c0_11 = arith.constant 0 : index
      %c0_12 = arith.constant 0 : index
      %c0_13 = arith.constant 0 : index
      %11 = vector.load %arg5[%c0_11, %c0_12, %c0_13] : memref<2x8x8xf32, #tpu.memory_space<vmem>>, vector<2x8x8xf32>
      tpu.vector_store %arg5[%c0_11, %c0_12, %c0_13], %10 {strides = array<i32>} : memref<2x8x8xf32, #tpu.memory_space<vmem>>, vector<2x8x8xf32>,
    } else {
    }
    %c0 = arith.constant 0 : index
    %c0_1 = arith.constant 0 : index
    %c0_2 = arith.constant 0 : index
    %3 = vector.load %arg5[%c0, %c0_1, %c0_2] : memref<2x8x8xf32, #tpu.memory_space<vmem>>, vector<2x8x8xf32>
    %c0_3 = arith.constant 0 : index
    %c0_4 = arith.constant 0 : index
    %c0_5 = arith.constant 0 : index
    %4 = vector.load %arg2[%c0_3, %c0_4, %c0_5] : memref<2x8x8xf32, #tpu.memory_space<vmem>>, vector<2x8x8xf32>
    %5 = arith.addf %3, %4 : vector<2x8x8xf32>
    %c0_6 = arith.constant 0 : index
    %c0_7 = arith.constant 0 : index
    %c0_8 = arith.constant 0 : index
    %6 = vector.load %arg5[%c0_6, %c0_7, %c0_8] : memref<2x8x8xf32, #tpu.memory_space<vmem>>, vector<2x8x8xf32>
    tpu.vector_store %arg5[%c0_6, %c0_7, %c0_8], %5 {strides = array<i32>} : memref<2x8x8xf32, #tpu.memory_space<vmem>>, vector<2x8x8xf32>,
    %c0_i32_9 = arith.constant 0 : i32
    %7 = arith.cmpi eq, %arg1, %c0_i32_9 : i32
    %8 = arith.extui %7 : i1 to i32
    %c0_i32_10 = arith.constant 0 : i32
    %9 = arith.cmpi ne, %8, %c0_i32_10 : i32
    scf.if %9 {
      %c0_11 = arith.constant 0 : index
      %c0_12 = arith.constant 0 : index
      %c0_13 = arith.constant 0 : index
      %10 = vector.load %arg5[%c0_11, %c0_12, %c0_13] : memref<2x8x8xf32, #tpu.memory_space<vmem>>, vector<2x8x8xf32>
      %cst = arith.constant dense<0.000000e+00> : vector<2x8xf32>
      %11 = vector.multi_reduction <add>, %10, %cst [2] : vector<2x8x8xf32> to vector<2x8xf32>
      %c0_14 = arith.constant 0 : index
      %c0_15 = arith.constant 0 : index
      %12 = vector.load %arg3[%c0_14, %c0_15] : memref<8x128xf32, #tpu.memory_space<vmem>>, vector<8x128xf32>
      %cst_16 = arith.constant dense<0.000000e+00> : vector<2x128xf32>
      %13 = tpu.matmul %11, %12, %cst_16 {dimension_numbers = #tpu.dot_dimension_numbers<[1], [0], [0], [1], [0, 0, 1, 1], [], []>} : vector<2x8xf32>, vector<8x128xf32>, vector<2x128xf32> -> vector<2x128xf32>
      %c0_17 = arith.constant 0 : index
      %c0_18 = arith.constant 0 : index
      %14 = vector.load %arg4[%c0_17, %c0_18] : memref<2x128xf32, #tpu.memory_space<vmem>>, vector<2x128xf32>
      tpu.vector_store %arg4[%c0_17, %c0_18], %13 {strides = array<i32>} : memref<2x128xf32, #tpu.memory_space<vmem>>, vector<2x128xf32>,
    } else {
    }
    return
  }
  func.func @transform_0(%arg0: i32, %arg1: i32) -> (i32, i32, i32) {
    %c0_i32 = arith.constant 0 : i32
    %c0_i32_0 = arith.constant 0 : i32
    return %arg0, %c0_i32, %arg1 : i32, i32, i32
  }
  func.func @transform_1(%arg0: i32, %arg1: i32) -> (i32, i32) {
    %c0_i32 = arith.constant 0 : i32
    %c0_i32_0 = arith.constant 0 : i32
    %c0_i32_1 = arith.constant 0 : i32
    return %c0_i32, %c0_i32_0 : i32, i32
  }
  func.func @transform_2(%arg0: i32, %arg1: i32) -> (i32, i32) {
    %c0_i32 = arith.constant 0 : i32
    %c0_i32_0 = arith.constant 0 : i32
    return %arg0, %c0_i32 : i32, i32
  }
}

</mosaic_0001>

<llo_original>
// kernel: tpu_custom_call.1
$region0: #{tpu_custom_call.1}
  #allocation0 [shape = 'u32[]', space=smem, size = 0x4, offset = 0x4, fixed_abs, tag = 'smem constant byte address 0x4 - core index']
  #allocation1 [shape = 'u32[144,128]{1,0:T(1,128)}', space=vmem, size = 0x12000, scoped, tag = 'internal scratch']
  #allocation2 [shape = 'f32[2,8,8]{2,1,0:T(8,128)}', space=vmem, size = 0x2000, scoped, tag = 'scratch operand']
  %s0 = inlined_call_operand.hbm [shape: f32[2,8,8], index: 0, kind: input, shape index: {}]
  %s1 = inlined_call_operand.hbm [shape: f32[8,128], index: 1, kind: input, shape index: {}]
  %s2 = inlined_call_operand.hbm [shape: f32[2,128], index: 2, kind: output, shape index: {}]
  %s3 = sld [smem:[#allocation0]]
  $region34: #{tpu_custom_call.1} parent=0
    _
  %s5 = ssub.s32 1, %s3
  %s6 = scalar_select 0, %s5, %s3
  $region1: #{tpu_custom_call.1} parent=0
    #allocation3 [shape = 'u8[8192]{0}', space=vmem, size = 0x2000, scoped, tag = 'input window, operand 0, single buffered']
    #allocation4 [shape = 's32[1]{0}', space=sflag, size = 0x4, scoped, tag = 'scoped memory for tpu_custom_call.1']
    #allocation5 [shape = 's32[1]{0}', space=sflag, size = 0x4, scoped, tag = 'scoped memory for tpu_custom_call.1']
    #allocation6 [shape = 'u8[4096]{0}', space=vmem, size = 0x1000, scoped, tag = 'input window, operand 1, single buffered']
    #allocation7 [shape = 's32[1]{0}', space=sflag, size = 0x4, scoped, tag = 'scoped memory for tpu_custom_call.1']
    #allocation8 [shape = 'u8[1024]{0}', space=vmem, size = 0x400, scoped, tag = 'output window, operand 0, single buffered']
    %7 = vsyncpa [#allocation4], 0
    %8 = vsyncpa [#allocation7], 0
    %9 = vsyncpa [#allocation5], 0
    // Predicated region
    $region2: #{tpu_custom_call.1} parent=1 // pred_check
      _
    $region3: #{tpu_custom_call.1} parent=1 // pred_check_branch
      %11 = sbr.rel (0) target = $region5
    $region4: #{tpu_custom_call.1} parent=1 // pred_region
      %s13 = ssub.s32 256, 256
      %14 = vsyncadd [#allocation4], %s13
      %s15 = sshll.u32 [#allocation3], 4
      %s16 = int_to_ptr.vmem [resolvable:$true] %s15
      %21 = dma.hbm_to_vmem [thread:$0]  %s0, 256, %s16, [#allocation4], 128, 128, 8
    $region5: #{tpu_custom_call.1} parent=1 // pred_fallthru
      _
    // Predicated region
    $region6: #{tpu_custom_call.1} parent=1 // pred_check
      _
    $region7: #{tpu_custom_call.1} parent=1 // pred_check_branch
      %23 = sbr.rel (0) target = $region9
    $region8: #{tpu_custom_call.1} parent=1 // pred_region
      %s25 = ssub.s32 128, 128
      %26 = vsyncadd [#allocation7], %s25
      %s28 = sshll.u32 [#allocation6], 4
      %s29 = int_to_ptr.vmem [resolvable:$true] %s28
      %31 = dma.hbm_to_vmem [thread:$0]  %s1, 128, %s29, [#allocation7]
    $region9: #{tpu_custom_call.1} parent=1 // pred_fallthru
      _
    // Predicated region
    $region10: #{tpu_custom_call.1} parent=1 // pred_check
      _
    $region11: #{tpu_custom_call.1} parent=1 // pred_check_branch
      %33 = sbr.rel (0) target = $region13
    $region12: #{tpu_custom_call.1} parent=1 // pred_region
      %34 = dma.done [#allocation4], 256
    $region13: #{tpu_custom_call.1} parent=1 // pred_fallthru
      _
    // Predicated region
    $region14: #{tpu_custom_call.1} parent=1 // pred_check
      _
    $region15: #{tpu_custom_call.1} parent=1 // pred_check_branch
      %36 = sbr.rel (0) target = $region17
    $region16: #{tpu_custom_call.1} parent=1 // pred_region
      %37 = dma.done [#allocation7], 128
    $region17: #{tpu_custom_call.1} parent=1 // pred_fallthru
      _
    %p38 = scmp.eq.s32.totalorder 0, 0
    // Predicated region
    $region18: #{tpu_custom_call.1} parent=1 // pred_check
      %p39 = pneg %p38
    $region19: #{tpu_custom_call.1} parent=1 // pred_check_branch
      %41 = sbr.rel (%p39) target = $region21
    $region20: #{tpu_custom_call.1} parent=1 // pred_region
      %vm42 = vcmask 64512
      %43 = vst.msk [vmem:[#allocation2] sm:$0xff] %vm42, 0.0
      %44 = vst.msk [vmem:[#allocation2 + $0x8] sm:$0xff] %vm42, 0.0
    $region21: #{tpu_custom_call.1} parent=1 // pred_fallthru
      _
    %v45 = vld [vmem:[#allocation2] sm:$0xff]
    %v46 = vld [vmem:[#allocation2 + $0x8] sm:$0xff]
    %v47 = vld [vmem:[#allocation3] sm:$0xff]
    %v48 = vld [vmem:[#allocation3 + $0x8] sm:$0xff]
    %v49 = vadd.f32 %v45, %v47
    %v50 = vadd.f32 %v46, %v48
    %vm51 = vcmask 64512
    %52 = vst.msk [vmem:[#allocation2] sm:$0xff] %vm51, %v49
    %53 = vst.msk [vmem:[#allocation2 + $0x8] sm:$0xff] %vm51, %v50
    // Predicated region
    $region22: #{tpu_custom_call.1} parent=1 // pred_check
      %p54 = pneg %p38
    $region23: #{tpu_custom_call.1} parent=1 // pred_check_branch
      %56 = sbr.rel (%p54) target = $region25
    $region24: #{tpu_custom_call.1} parent=1 // pred_region
      %v57 = vld [vmem:[#allocation2] sm:$0xff]
      %v58 = vld [vmem:[#allocation2 + $0x8] sm:$0xff]
      %v59 = vsel %vm51, %v57, 0.0
      %60 = vadd.xlane.f32.xlu0 %v59
      %v61 = vpop.xlane.xlu0 %60
      %v62 = vsel %vm51, %v58, 0.0
      %63 = vadd.xlane.f32.xlu0 %v62
      %v64 = vpop.xlane.xlu0 %63
      %v65 = vld [vmem:[#allocation6] sm:$0xff]
      %v68 = vlaneseq
      %v69 = vand.u32 %v68, 127
      %v70 = vlaneseq
      %v71 = vshrl.u32 %v70, 7
      %v72 = vsub.s32 %v69, %v71
      %v73 = vrot.slane %v61, %v72
      %v74 = vlaneseq
      %v75 = vshrl.u32 %v74, 7
      %v76 = vsub.s32 %v69, %v75
      %v77 = vrot.slane %v64, %v76
      %vm78 = vcmask 1041409
      %v79 = vsel %vm78, %v77, %v73
      %v80 = vsel %vm51, %v79, 0
      %82 = vmatprep.subr.mxu0 0.0
      %83 = vmatpush1.msra.mxu0 %v65
      %84 = vmatprep.subr.mxu0 0.0
      %85 = vmatpush1.msra.mxu0 0.0
      %86 = vmatprep.subr.mxu0 0.0
      %87 = vmatpush1.msra.mxu0 0.0
      %88 = vmatprep.subr.mxu0 0.0
      %89 = vmatpush1.msra.mxu0 0.0
      %90 = vmatprep.subr.mxu0 0.0
      %91 = vmatpush1.msra.mxu0 0.0
      %92 = vmatprep.subr.mxu0 0.0
      %93 = vmatpush1.msra.mxu0 0.0
      %94 = vmatprep.subr.mxu0 0.0
      %95 = vmatpush1.msra.mxu0 0.0
      %96 = vmatprep.subr.mxu0 0.0
      %97 = vmatpush1.msra.mxu0 0.0
      %98 = vmatprep.subr.mxu0 0.0
      %99 = vmatpush1.msra.mxu0 0.0
      %100 = vmatprep.subr.mxu0 0.0
      %101 = vmatpush1.msra.mxu0 0.0
      %102 = vmatprep.subr.mxu0 0.0
      %103 = vmatpush1.msra.mxu0 0.0
      %104 = vmatprep.subr.mxu0 0.0
      %105 = vmatpush1.msra.mxu0 0.0
      %106 = vmatprep.subr.mxu0 0.0
      %107 = vmatpush1.msra.mxu0 0.0
      %108 = vmatprep.subr.mxu0 0.0
      %109 = vmatpush1.msra.mxu0 0.0
      %110 = vmatprep.subr.mxu0 0.0
      %111 = vmatpush1.msra.mxu0 0.0
      %112 = vmatprep.subr.mxu0 0.0
      %113 = vmatpush1.msra.mxu0 0.0
      %114 = vmatprep.subr.mxu0 0.0
      %115 = vmatpush1.msra.mxu0 0.0
      %116 = vmatprep.subr.mxu0 0.0
      %117 = vmatpush1.msra.mxu0 0.0
      %118 = vmatprep.subr.mxu0 0.0
      %119 = vmatpush1.msra.mxu0 0.0
      %120 = vmatprep.subr.mxu0 0.0
      %121 = vmatpush1.msra.mxu0 0.0
      %122 = vmatprep.subr.mxu0 0.0
      %123 = vmatpush1.msra.mxu0 0.0
      %124 = vmatprep.subr.mxu0 0.0
      %125 = vmatpush1.msra.mxu0 0.0
      %126 = vmatprep.subr.mxu0 0.0
      %127 = vmatpush1.msra.mxu0 0.0
      %128 = vmatprep.subr.mxu0 0.0
      %129 = vmatpush1.msra.mxu0 0.0
      %130 = vmatprep.subr.mxu0 0.0
      %131 = vmatpush1.msra.mxu0 0.0
      %132 = vmatprep.subr.mxu0 0.0
      %133 = vmatpush1.msra.mxu0 0.0
      %134 = vmatprep.subr.mxu0 0.0
      %135 = vmatpush1.msra.mxu0 0.0
      %136 = vmatprep.subr.mxu0 0.0
      %137 = vmatpush1.msra.mxu0 0.0
      %138 = vmatprep.subr.mxu0 0.0
      %139 = vmatpush1.msra.mxu0 0.0
      %140 = vmatprep.subr.mxu0 0.0
      %141 = vmatpush1.msra.mxu0 0.0
      %142 = vmatprep.subr.mxu0 0.0
      %143 = vmatpush1.msra.mxu0 0.0
      %144 = vmatprep.subr.mxu0 0.0
      %145 = vmatpush1.msra.mxu0 0.0
      %146 = vmatprep.mubr.f32.mxu0 0.0
      %147 = vmatmul.mubr.f32.gmra.mrb[0].mxu0 %v80
      %v148 = vpop.f32.mrb[0].mxu0
      %v149 = vadd.f32 0.0, %v148
      %v150 = vpop.f32.mrb[0].mxu0
      %151 = vdwg.mxu0
      %152 = vst [vmem:[#allocation8] sm:$0x3] %v149
    $region25: #{tpu_custom_call.1} parent=1 // pred_fallthru
      _
    // Predicated region
    $region26: #{tpu_custom_call.1} parent=1 // pred_check
      _
    $region27: #{tpu_custom_call.1} parent=1 // pred_check_branch
      %154 = sbr.rel (0) target = $region29
    $region28: #{tpu_custom_call.1} parent=1 // pred_region
      %s156 = ssub.s32 32, 32
      %157 = vsyncadd [#allocation5], %s156
      %s159 = sshll.u32 [#allocation8], 4
      %s160 = int_to_ptr.vmem [resolvable:$true] %s159
      %162 = dma.vmem_to_hbm [thread:$0]  %s160, 32, %s2, [#allocation5]
    $region29: #{tpu_custom_call.1} parent=1 // pred_fallthru
      _
    // Predicated region
    $region30: #{tpu_custom_call.1} parent=1 // pred_check
      _
    $region31: #{tpu_custom_call.1} parent=1 // pred_check_branch
      %164 = sbr.rel (0) target = $region33
    $region32: #{tpu_custom_call.1} parent=1 // pred_region
      %165 = dma.done [#allocation5], 32
    $region33: #{tpu_custom_call.1} parent=1 // pred_fallthru
      _
    %166 = vsyncpa [#allocation4], 1
    %167 = vsyncpa [#allocation7], 1
    %168 = vsyncpa [#allocation5], 1

</llo_original>
